<compile_context>
chip_gen: v5e
topology: v5e:2x2
jax: 0.10.0
libtpu: 0.0.40
codegen_flags: <defaults>
</compile_context>

<pallas_src>
import jax
import jax.numpy as jnp
from jax.experimental import pallas as pl
from jax.experimental.pallas import tpu as pltpu

LANE = 128


def _round_up(n, m):
    return ((n + m - 1) // m) * m


# ---------------------------------------------------------------------------
# Kernel: T recurrent LSTM steps + dense head + softmax, state resident in VMEM
# ---------------------------------------------------------------------------
def senti_seq_kernel(x_ref, s0_ref, wx_ref, wh_ref, bg_ref, wd_ref, bd_ref,
                     attn_ref, state_ref, hc_ref):
    P = wd_ref.shape[0]               # padded per-gate / head width (128)
    t = pl.program_id(0)

    # Load the (padded) initial recurrent state into VMEM scratch once.
    @pl.when(t == 0)
    def _():
        hc_ref[...] = s0_ref[:, P:]   # [h0 | c0]; pad lanes are exactly 0

    h0 = hc_ref[:, 0:P]
    c0 = hc_ref[:, P:2 * P]
    x = x_ref[0]                      # (B, I)

    # Gate matmuls: x@Wx + h@Wh + b.  Every gate block is 128-lane aligned
    # (i/f/g/o at lane offsets 0/128/256/384) -> pure vreg selection, no XLU.
    gates = (jnp.dot(x, wx_ref[...], preferred_element_type=jnp.float32)
             + jnp.dot(h0, wh_ref[...], preferred_element_type=jnp.float32)
             + bg_ref[...])
    i = jax.nn.sigmoid(gates[:, 0 * P:1 * P])
    f = jax.nn.sigmoid(gates[:, 1 * P:2 * P])
    g = jnp.tanh(gates[:, 2 * P:3 * P])
    o = jax.nn.sigmoid(gates[:, 3 * P:4 * P])

    # Pad lanes: gates = 0 -> i=f=o=0.5, g=0; with c0 pad = 0 the state pad
    # lanes stay exactly 0 every step (the dense head relies on this).
    c1 = f * c0 + i * g
    h1 = o * jnp.tanh(c1)

    # Dense head + softmax.  Padded output lanes carry a -1e30 bias so their
    # exp underflows to exactly 0.  Exact divide keeps rows summing to 1.
    senti = (jnp.dot(h1, wd_ref[...], preferred_element_type=jnp.float32)
             + bd_ref[...])
    m = jnp.max(senti, axis=1, keepdims=True)
    e = jnp.exp(senti - m)
    attn = e / jnp.sum(e, axis=1, keepdims=True)

    hc_ref[...] = jnp.concatenate([h1, c1], axis=1)
    attn_ref[...] = attn[None, :, :]

    # Final lane-dense state slab [attn | h | c]; same layout as the state
    # input, so it seeds a later call with zero wrapper re-layout.
    @pl.when(t == pl.num_programs(0) - 1)
    def _():
        state_ref[...] = jnp.concatenate([attn, h1, c1], axis=1)


# ---------------------------------------------------------------------------
# One-time weight re-layout (out of the hot path)
# ---------------------------------------------------------------------------
def prepare_params(params):
    I = params["W_ih"].shape[1]
    H = params["W_hh"].shape[1]
    O = params["W_d"].shape[0]
    P = _round_up(max(H, O), LANE)

    b_sum = params["b_ih"] + params["b_hh"]                  # (4H,)
    wx = jnp.zeros((I, 4 * P), jnp.float32)
    wh = jnp.zeros((P, 4 * P), jnp.float32)
    bg = jnp.zeros((1, 4 * P), jnp.float32)
    for k in range(4):                                       # PyTorch order i,f,g,o
        wx = wx.at[:, k * P:k * P + H].set(params["W_ih"][k * H:(k + 1) * H, :].T)
        wh = wh.at[:H, k * P:k * P + H].set(params["W_hh"][k * H:(k + 1) * H, :].T)
        bg = bg.at[:, k * P:k * P + H].set(b_sum[k * H:(k + 1) * H][None, :])

    wd = jnp.zeros((P, P), jnp.float32).at[:H, :O].set(params["W_d"].T)
    bd = jnp.full((1, P), -1e30, jnp.float32).at[:, :O].set(params["b_d"][None, :])
    return dict(wx=wx, wh=wh, bg=bg, wd=wd, bd=bd, I=I, H=H, O=O, P=P)


# ---------------------------------------------------------------------------
# Wrappers
# ---------------------------------------------------------------------------
def senti_block_forward_seq(xs, prepared, state0=None):
    """Run T recurrent steps in one pallas_call.

    xs: (T, B, I).  state0: None or a (B, 3P) slab from a previous call.
    Returns (attn (T, B, O), state slab (B, 3P))."""
    T, B, I = xs.shape
    P, O = prepared["P"], prepared["O"]
    if state0 is None:
        state0 = jnp.zeros((B, 3 * P), jnp.float32)

    attn_seq, state = pl.pallas_call(
        senti_seq_kernel,
        grid=(T,),
        in_specs=[
            pl.BlockSpec((1, B, I), lambda t: (t, 0, 0)),       # x_t, pipelined
            pl.BlockSpec((B, 3 * P), lambda t: (0, 0)),         # initial state
            pl.BlockSpec((I, 4 * P), lambda t: (0, 0)),         # Wx  (resident)
            pl.BlockSpec((P, 4 * P), lambda t: (0, 0)),         # Wh  (resident)
            pl.BlockSpec((1, 4 * P), lambda t: (0, 0)),         # gate bias
            pl.BlockSpec((P, P), lambda t: (0, 0)),             # Wd  (resident)
            pl.BlockSpec((1, P), lambda t: (0, 0)),             # dense bias
        ],
        out_specs=(
            pl.BlockSpec((1, B, P), lambda t: (t, 0, 0)),       # attn per step
            pl.BlockSpec((B, 3 * P), lambda t: (0, 0)),         # final state
        ),
        out_shape=(
            jax.ShapeDtypeStruct((T, B, P), jnp.float32),
            jax.ShapeDtypeStruct((B, 3 * P), jnp.float32),
        ),
        scratch_shapes=[pltpu.VMEM((B, 2 * P), jnp.float32)],   # resident [h|c]
        compiler_params=pltpu.CompilerParams(
            dimension_semantics=("arbitrary",)),                # serial recurrence
    )(xs, state0, prepared["wx"], prepared["wh"], prepared["bg"],
      prepared["wd"], prepared["bd"])

    return attn_seq[:, :, :O], state


def senti_block_forward(x, prepared, hidden=None):
    """Single-timestep forward (mirrors SentiBlock.forward).

    hidden: None, a (B, 3P) state slab from a previous call (fast path), or a
    PyTorch-layout ((1,B,H),(1,B,H)) tuple.  Returns (attn (B,O), state slab)."""
    if hidden is not None and isinstance(hidden, (tuple, list)):
        hidden = hc_to_state(hidden[0], hidden[1], prepared)
    attn_seq, state = senti_block_forward_seq(x[None], prepared, hidden)
    return attn_seq[0], state


def state_to_hc(state, prepared):
    """Padded state slab -> PyTorch-layout ((1,B,H),(1,B,H)) hidden."""
    H, P = prepared["H"], prepared["P"]
    return state[None, :, P:P + H], state[None, :, 2 * P:2 * P + H]


def hc_to_state(h, c, prepared):
    """PyTorch-layout hidden -> padded state slab (pad lanes must stay 0)."""
    B = h.shape[1]
    H, P = prepared["H"], prepared["P"]
    state = jnp.zeros((B, 3 * P), jnp.float32)
    state = state.at[:, P:P + H].set(h[0])
    state = state.at[:, 2 * P:2 * P + H].set(c[0])
    return state


# ---------------------------------------------------------------------------
# Pure-JAX reference (mirrors the PyTorch module) and deterministic init
# ---------------------------------------------------------------------------
def senti_block_ref(x, params, hidden=None):
    B = x.shape[0]
    H = params["W_hh"].shape[1]
    if hidden is None:
        h0 = jnp.zeros((B, H), jnp.float32)
        c0 = jnp.zeros((B, H), jnp.float32)
    else:
        h0, c0 = hidden[0][0], hidden[1][0]
    hp = jax.lax.Precision.HIGHEST
    gates = (jnp.dot(x, params["W_ih"].T, precision=hp)
             + jnp.dot(h0, params["W_hh"].T, precision=hp)
             + params["b_ih"] + params["b_hh"])
    i = jax.nn.sigmoid(gates[:, 0 * H:1 * H])
    f = jax.nn.sigmoid(gates[:, 1 * H:2 * H])
    g = jnp.tanh(gates[:, 2 * H:3 * H])
    o = jax.nn.sigmoid(gates[:, 3 * H:4 * H])
    c1 = f * c0 + i * g
    h1 = o * jnp.tanh(c1)
    senti = jnp.dot(h1, params["W_d"].T, precision=hp) + params["b_d"]
    attn = jax.nn.softmax(senti, axis=1)
    return attn, (h1[None, :, :], c1[None, :, :])


def init_params(key, input_size, hidden_size, output_size):
    """Deterministic init mirroring init_rnn + nn.Linear defaults."""
    k_ih, k_hh, k_wd, k_bd = jax.random.split(key, 4)

    fan_out, fan_in = 4 * hidden_size, input_size
    bound = (6.0 / (fan_in + fan_out)) ** 0.5
    W_ih = jax.random.uniform(k_ih, (4 * hidden_size, input_size),
                              jnp.float32, -bound, bound)

    a = jax.random.normal(k_hh, (4 * hidden_size, hidden_size), jnp.float32)
    q, r = jnp.linalg.qr(a)
    d = jnp.sign(jnp.diag(r))
    d = jnp.where(d == 0, 1.0, d)
    W_hh = q * d[None, :]

    b_ih = jnp.ones((4 * hidden_size,), jnp.float32)
    b_hh = jnp.ones((4 * hidden_size,), jnp.float32)

    db = 1.0 / (hidden_size ** 0.5)
    W_d = jax.random.uniform(k_wd, (output_size, hidden_size), jnp.float32, -db, db)
    b_d = jax.random.uniform(k_bd, (output_size,), jnp.float32, -db, db)

    return dict(W_ih=W_ih, W_hh=W_hh, b_ih=b_ih, b_hh=b_hh, W_d=W_d, b_d=b_d)


if __name__ == "__main__":
    key = jax.random.PRNGKey(0)
    k_x, k_seq, k_p = jax.random.split(key, 3)

    B, I, H, O, T = 2, 32, 32, 8, 8
    x1 = jax.random.normal(k_x, (B, I), jnp.float32)
    xs = jax.random.normal(k_seq, (T, B, I), jnp.float32)
    params = init_params(k_p, I, H, O)
    prepared = prepare_params(params)        # one-time weight re-layout

    step0 = jax.jit(lambda x: senti_block_forward(x, prepared))
    step = jax.jit(lambda x, s: senti_block_forward(x, prepared, s))
    seq = jax.jit(lambda x: senti_block_forward_seq(x, prepared))

    # Single step (hidden=None), a chained step (padded state passed straight
    # back), and T fused steps in one pallas_call.
    attn1, st1 = step0(x1)
    attn2, st2 = step(xs[0], st1)
    attn_seq, st_seq = seq(xs)
    jax.block_until_ready((attn1, st1, attn2, st2, attn_seq, st_seq))

    # References.
    r_attn1, r_hid1 = senti_block_ref(x1, params)
    r_attn2, r_hid2 = senti_block_ref(xs[0], params, r_hid1)
    r_hid = None
    r_attn_list = []
    for t in range(T):
        a_t, r_hid = senti_block_ref(xs[t], params, r_hid)
        r_attn_list.append(a_t)
    r_attn_seq = jnp.stack(r_attn_list, axis=0)

    h1_t, c1_t = state_to_hc(st1, prepared)
    h2_t, c2_t = state_to_hc(st2, prepared)
    hs_t, cs_t = state_to_hc(st_seq, prepared)

    assert attn1.shape == (B, O) and attn2.shape == (B, O)
    assert attn_seq.shape == (T, B, O)
    assert h1_t.shape == (1, B, H) and c1_t.shape == (1, B, H)
    assert jnp.allclose(jnp.sum(attn1, axis=1), jnp.ones((B,)), atol=1e-4)
    assert jnp.allclose(jnp.sum(attn2, axis=1), jnp.ones((B,)), atol=1e-4)
    assert jnp.allclose(jnp.sum(attn_seq, axis=2), jnp.ones((T, B)), atol=1e-4)

    tol = dict(atol=2e-3, rtol=2e-3)
    assert jnp.allclose(attn1, r_attn1, **tol)
    assert jnp.allclose(attn2, r_attn2, **tol)
    assert jnp.allclose(h1_t, r_hid1[0], **tol)
    assert jnp.allclose(c1_t, r_hid1[1], **tol)
    assert jnp.allclose(h2_t, r_hid2[0], **tol)
    assert jnp.allclose(c2_t, r_hid2[1], **tol)
    assert jnp.allclose(attn_seq, r_attn_seq, **tol)
    assert jnp.allclose(hs_t, r_hid[0], **tol)
    assert jnp.allclose(cs_t, r_hid[1], **tol)

    print("KERNEL_OK")
</pallas_src>

<mosaic_0001>
module attributes {stable_mosaic.version = 11 : i64} {
  func.func @senti_seq_kernel(%arg0: i32, %arg1: memref<1x2x32xf32, #tpu.memory_space<vmem>>, %arg2: memref<2x384xf32, #tpu.memory_space<vmem>>, %arg3: memref<32x512xf32, #tpu.memory_space<vmem>>, %arg4: memref<128x512xf32, #tpu.memory_space<vmem>>, %arg5: memref<1x512xf32, #tpu.memory_space<vmem>>, %arg6: memref<128x128xf32, #tpu.memory_space<vmem>>, %arg7: memref<1x128xf32, #tpu.memory_space<vmem>>, %arg8: memref<1x2x128xf32, #tpu.memory_space<vmem>>, %arg9: memref<2x384xf32, #tpu.memory_space<vmem>>, %arg10: memref<2x256xf32, #tpu.memory_space<vmem>>) attributes {dimension_semantics = [#tpu.dimension_semantics<arbitrary>], iteration_bounds = array<i64: 1>, scalar_prefetch = 0 : i64, scratch_operands = 1 : i64, tpu.core_type = #tpu.core_type<tc>, window_params = [{transform_indices = @transform_0, window_bounds = array<i64: 1, 2, 32>}, {pipeline_mode = #tpu.pipeline_mode<synchronous>, transform_indices = @transform_1, window_bounds = array<i64: 2, 384>}, {pipeline_mode = #tpu.pipeline_mode<synchronous>, transform_indices = @transform_2, window_bounds = array<i64: 32, 512>}, {pipeline_mode = #tpu.pipeline_mode<synchronous>, transform_indices = @transform_3, window_bounds = array<i64: 128, 512>}, {pipeline_mode = #tpu.pipeline_mode<synchronous>, transform_indices = @transform_4, window_bounds = array<i64: 1, 512>}, {pipeline_mode = #tpu.pipeline_mode<synchronous>, transform_indices = @transform_5, window_bounds = array<i64: 128, 128>}, {pipeline_mode = #tpu.pipeline_mode<synchronous>, transform_indices = @transform_6, window_bounds = array<i64: 1, 128>}, {transform_indices = @transform_7, window_bounds = array<i64: 1, 2, 128>}, {pipeline_mode = #tpu.pipeline_mode<synchronous>, transform_indices = @transform_8, window_bounds = array<i64: 2, 384>}]} {
    %c0_i32 = arith.constant 0 : i32
    %0 = arith.cmpi eq, %arg0, %c0_i32 : i32
    %1 = arith.extui %0 : i1 to i32
    %c0_i32_0 = arith.constant 0 : i32
    %2 = arith.cmpi ne, %1, %c0_i32_0 : i32
    scf.if %2 {
      %c0_30 = arith.constant 0 : index
      %c128_31 = arith.constant 128 : index
      %61 = vector.load %arg2[%c0_30, %c128_31] : memref<2x384xf32, #tpu.memory_space<vmem>>, vector<2x256xf32>
      %c0_32 = arith.constant 0 : index
      %c0_33 = arith.constant 0 : index
      %62 = vector.load %arg10[%c0_32, %c0_33] : memref<2x256xf32, #tpu.memory_space<vmem>>, vector<2x256xf32>
      tpu.vector_store %arg10[%c0_32, %c0_33], %61 {strides = array<i32>} : memref<2x256xf32, #tpu.memory_space<vmem>>, vector<2x256xf32>,
    } else {
    }
    %c0 = arith.constant 0 : index
    %c0_1 = arith.constant 0 : index
    %3 = vector.load %arg10[%c0, %c0_1] : memref<2x256xf32, #tpu.memory_space<vmem>>, vector<2x128xf32>
    %c0_2 = arith.constant 0 : index
    %c128 = arith.constant 128 : index
    %4 = vector.load %arg10[%c0_2, %c128] : memref<2x256xf32, #tpu.memory_space<vmem>>, vector<2x128xf32>
    %c0_3 = arith.constant 0 : index
    %c0_4 = arith.constant 0 : index
    %c0_5 = arith.constant 0 : index
    %5 = vector.load %arg1[%c0_3, %c0_4, %c0_5] : memref<1x2x32xf32, #tpu.memory_space<vmem>>, vector<1x2x32xf32>
    %6 = vector.shape_cast %5 : vector<1x2x32xf32> to vector<2x32xf32>
    %c0_6 = arith.constant 0 : index
    %c0_7 = arith.constant 0 : index
    %7 = vector.load %arg3[%c0_6, %c0_7] : memref<32x512xf32, #tpu.memory_space<vmem>>, vector<32x512xf32>
    %cst = arith.constant dense<0.000000e+00> : vector<2x512xf32>
    %8 = tpu.matmul %6, %7, %cst {dimension_numbers = #tpu.dot_dimension_numbers<[1], [0], [0], [1], [0, 0, 1, 1], [], []>} : vector<2x32xf32>, vector<32x512xf32>, vector<2x512xf32> -> vector<2x512xf32>
    %c0_8 = arith.constant 0 : index
    %c0_9 = arith.constant 0 : index
    %9 = vector.load %arg4[%c0_8, %c0_9] : memref<128x512xf32, #tpu.memory_space<vmem>>, vector<128x512xf32>
    %cst_10 = arith.constant dense<0.000000e+00> : vector<2x512xf32>
    %10 = tpu.matmul %3, %9, %cst_10 {dimension_numbers = #tpu.dot_dimension_numbers<[1], [0], [0], [1], [0, 0, 1, 1], [], []>} : vector<2x128xf32>, vector<128x512xf32>, vector<2x512xf32> -> vector<2x512xf32>
    %11 = arith.addf %8, %10 : vector<2x512xf32>
    %c0_11 = arith.constant 0 : index
    %c0_12 = arith.constant 0 : index
    %12 = vector.load %arg5[%c0_11, %c0_12] : memref<1x512xf32, #tpu.memory_space<vmem>>, vector<1x512xf32>
    %13 = vector.broadcast %12 : vector<1x512xf32> to vector<2x512xf32>
    %14 = arith.addf %11, %13 : vector<2x512xf32>
    %15 = vector.extract_strided_slice %14 {offsets = [0, 0], sizes = [2, 128], strides = [1, 1]} : vector<2x512xf32> to vector<2x128xf32>
    %16 = arith.negf %15 : vector<2x128xf32>
    %17 = math.exp %16 : vector<2x128xf32>
    %cst_13 = arith.constant 1.000000e+00 : f32
    %18 = vector.broadcast %cst_13 : f32 to vector<2x128xf32>
    %19 = arith.addf %18, %17 : vector<2x128xf32>
    %20 = arith.divf %18, %19 : vector<2x128xf32>
    %21 = vector.extract_strided_slice %14 {offsets = [0, 128], sizes = [2, 128], strides = [1, 1]} : vector<2x512xf32> to vector<2x128xf32>
    %22 = arith.negf %21 : vector<2x128xf32>
    %23 = math.exp %22 : vector<2x128xf32>
    %cst_14 = arith.constant 1.000000e+00 : f32
    %24 = vector.broadcast %cst_14 : f32 to vector<2x128xf32>
    %25 = arith.addf %24, %23 : vector<2x128xf32>
    %26 = arith.divf %24, %25 : vector<2x128xf32>
    %27 = vector.extract_strided_slice %14 {offsets = [0, 256], sizes = [2, 128], strides = [1, 1]} : vector<2x512xf32> to vector<2x128xf32>
    %28 = math.tanh %27 : vector<2x128xf32>
    %29 = vector.extract_strided_slice %14 {offsets = [0, 384], sizes = [2, 128], strides = [1, 1]} : vector<2x512xf32> to vector<2x128xf32>
    %30 = arith.negf %29 : vector<2x128xf32>
    %31 = math.exp %30 : vector<2x128xf32>
    %cst_15 = arith.constant 1.000000e+00 : f32
    %32 = vector.broadcast %cst_15 : f32 to vector<2x128xf32>
    %33 = arith.addf %32, %31 : vector<2x128xf32>
    %34 = arith.divf %32, %33 : vector<2x128xf32>
    %35 = arith.mulf %26, %4 : vector<2x128xf32>
    %36 = arith.mulf %20, %28 : vector<2x128xf32>
    %37 = arith.addf %35, %36 : vector<2x128xf32>
    %38 = math.tanh %37 : vector<2x128xf32>
    %39 = arith.mulf %34, %38 : vector<2x128xf32>
    %c0_16 = arith.constant 0 : index
    %c0_17 = arith.constant 0 : index
    %40 = vector.load %arg6[%c0_16, %c0_17] : memref<128x128xf32, #tpu.memory_space<vmem>>, vector<128x128xf32>
    %cst_18 = arith.constant dense<0.000000e+00> : vector<2x128xf32>
    %41 = tpu.matmul %39, %40, %cst_18 {dimension_numbers = #tpu.dot_dimension_numbers<[1], [0], [0], [1], [0, 0, 1, 1], [], []>} : vector<2x128xf32>, vector<128x128xf32>, vector<2x128xf32> -> vector<2x128xf32>
    %c0_19 = arith.constant 0 : index
    %c0_20 = arith.constant 0 : index
    %42 = vector.load %arg7[%c0_19, %c0_20] : memref<1x128xf32, #tpu.memory_space<vmem>>, vector<1x128xf32>
    %43 = vector.broadcast %42 : vector<1x128xf32> to vector<2x128xf32>
    %44 = arith.addf %41, %43 : vector<2x128xf32>
    %cst_21 = arith.constant dense<0xFF800000> : vector<2xf32>
    %45 = vector.multi_reduction <maximumf>, %44, %cst_21 [1] : vector<2x128xf32> to vector<2xf32>
    %46 = vector.shape_cast %45 : vector<2xf32> to vector<2x1xf32>
    %47 = vector.broadcast %46 : vector<2x1xf32> to vector<2x128xf32>
    %48 = arith.subf %44, %47 : vector<2x128xf32>
    %49 = math.exp %48 : vector<2x128xf32>
    %cst_22 = arith.constant dense<0.000000e+00> : vector<2xf32>
    %50 = vector.multi_reduction <add>, %49, %cst_22 [1] : vector<2x128xf32> to vector<2xf32>
    %51 = vector.shape_cast %50 : vector<2xf32> to vector<2x1xf32>
    %52 = vector.broadcast %51 : vector<2x1xf32> to vector<2x128xf32>
    %53 = arith.divf %49, %52 : vector<2x128xf32>
    %54 = tpu.concatenate %39, %37 in 1 : vector<2x128xf32>, vector<2x128xf32> -> vector<2x256xf32>
    %c0_23 = arith.constant 0 : index
    %c0_24 = arith.constant 0 : index
    %55 = vector.load %arg10[%c0_23, %c0_24] : memref<2x256xf32, #tpu.memory_space<vmem>>, vector<2x256xf32>
    tpu.vector_store %arg10[%c0_23, %c0_24], %54 {strides = array<i32>} : memref<2x256xf32, #tpu.memory_space<vmem>>, vector<2x256xf32>,
    %56 = vector.shape_cast %53 : vector<2x128xf32> to vector<1x2x128xf32>
    %c0_25 = arith.constant 0 : index
    %c0_26 = arith.constant 0 : index
    %c0_27 = arith.constant 0 : index
    %57 = vector.load %arg8[%c0_25, %c0_26, %c0_27] : memref<1x2x128xf32, #tpu.memory_space<vmem>>, vector<1x2x128xf32>
    tpu.vector_store %arg8[%c0_25, %c0_26, %c0_27], %56 {strides = array<i32>} : memref<1x2x128xf32, #tpu.memory_space<vmem>>, vector<1x2x128xf32>,
    %c0_i32_28 = arith.constant 0 : i32
    %58 = arith.cmpi eq, %arg0, %c0_i32_28 : i32
    %59 = arith.extui %58 : i1 to i32
    %c0_i32_29 = arith.constant 0 : i32
    %60 = arith.cmpi ne, %59, %c0_i32_29 : i32
    scf.if %60 {
      %61 = tpu.concatenate %53, %39, %37 in 1 : vector<2x128xf32>, vector<2x128xf32>, vector<2x128xf32> -> vector<2x384xf32>
      %c0_30 = arith.constant 0 : index
      %c0_31 = arith.constant 0 : index
      %62 = vector.load %arg9[%c0_30, %c0_31] : memref<2x384xf32, #tpu.memory_space<vmem>>, vector<2x384xf32>
      tpu.vector_store %arg9[%c0_30, %c0_31], %61 {strides = array<i32>} : memref<2x384xf32, #tpu.memory_space<vmem>>, vector<2x384xf32>,
    } else {
    }
    return
  }
  func.func @transform_0(%arg0: i32) -> (i32, i32, i32) {
    %c0_i32 = arith.constant 0 : i32
    %c0_i32_0 = arith.constant 0 : i32
    %c0_i32_1 = arith.constant 0 : i32
    return %arg0, %c0_i32, %c0_i32_0 : i32, i32, i32
  }
  func.func @transform_1(%arg0: i32) -> (i32, i32) {
    %c0_i32 = arith.constant 0 : i32
    %c0_i32_0 = arith.constant 0 : i32
    %c0_i32_1 = arith.constant 0 : i32
    return %c0_i32, %c0_i32_0 : i32, i32
  }
  func.func @transform_2(%arg0: i32) -> (i32, i32) {
    %c0_i32 = arith.constant 0 : i32
    %c0_i32_0 = arith.constant 0 : i32
    %c0_i32_1 = arith.constant 0 : i32
    return %c0_i32, %c0_i32_0 : i32, i32
  }
  func.func @transform_3(%arg0: i32) -> (i32, i32) {
    %c0_i32 = arith.constant 0 : i32
    %c0_i32_0 = arith.constant 0 : i32
    %c0_i32_1 = arith.constant 0 : i32
    return %c0_i32, %c0_i32_0 : i32, i32
  }
  func.func @transform_4(%arg0: i32) -> (i32, i32) {
    %c0_i32 = arith.constant 0 : i32
    %c0_i32_0 = arith.constant 0 : i32
    %c0_i32_1 = arith.constant 0 : i32
    return %c0_i32, %c0_i32_0 : i32, i32
  }
  func.func @transform_5(%arg0: i32) -> (i32, i32) {
    %c0_i32 = arith.constant 0 : i32
    %c0_i32_0 = arith.constant 0 : i32
    %c0_i32_1 = arith.constant 0 : i32
    return %c0_i32, %c0_i32_0 : i32, i32
  }
  func.func @transform_6(%arg0: i32) -> (i32, i32) {
    %c0_i32 = arith.constant 0 : i32
    %c0_i32_0 = arith.constant 0 : i32
    %c0_i32_1 = arith.constant 0 : i32
    return %c0_i32, %c0_i32_0 : i32, i32
  }
  func.func @transform_7(%arg0: i32) -> (i32, i32, i32) {
    %c0_i32 = arith.constant 0 : i32
    %c0_i32_0 = arith.constant 0 : i32
    %c0_i32_1 = arith.constant 0 : i32
    return %arg0, %c0_i32, %c0_i32_0 : i32, i32, i32
  }
  func.func @transform_8(%arg0: i32) -> (i32, i32) {
    %c0_i32 = arith.constant 0 : i32
    %c0_i32_0 = arith.constant 0 : i32
    %c0_i32_1 = arith.constant 0 : i32
    return %c0_i32, %c0_i32_0 : i32, i32
  }
}

</mosaic_0001>

<llo_original>
// kernel: _lambda_.1
$region0: #{_lambda_.1}
  #allocation0 [shape = 'u32[]', space=smem, size = 0x4, offset = 0x4, fixed_abs, tag = 'smem constant byte address 0x4 - core index']
  #allocation1 [shape = 'u32[72,128]{1,0:T(1,128)}', space=vmem, size = 0x9000, scoped, tag = 'internal scratch']
  #allocation2 [shape = 'f32[2,256]{1,0:T(2,128)}', space=vmem, size = 0x800, scoped, tag = 'scratch operand']
  %s0 = inlined_call_operand.vmem [shape: f32[1,2,32], index: 0, kind: input, shape index: {}]
  %s1 = inlined_call_operand.vmem [shape: f32[2,384], index: 1, kind: input, shape index: {}]
  %s2 = inlined_call_operand.hbm [shape: f32[32,512], index: 2, kind: input, shape index: {}]
  %s3 = inlined_call_operand.hbm [shape: f32[128,512], index: 3, kind: input, shape index: {}]
  %s4 = inlined_call_operand.vmem [shape: f32[1,512], index: 4, kind: input, shape index: {}]
  %s5 = inlined_call_operand.hbm [shape: f32[128,128], index: 5, kind: input, shape index: {}]
  %s6 = inlined_call_operand.vmem [shape: f32[1,128], index: 6, kind: input, shape index: {}]
  %s7 = inlined_call_operand.vmem [shape: f32[1,2,128], index: 7, kind: output, shape index: {0}]
  %s8 = inlined_call_operand.hbm [shape: f32[2,384], index: 8, kind: output, shape index: {1}]
  %9 = xla_tuple %s7, %s8
  %s10 = sld [smem:[#allocation0]]
  $region66: #{_lambda_.1} parent=0
    _
  %s12 = ssub.s32 1, %s10
  %s13 = scalar_select 0, %s12, %s10
  $region1: #{_lambda_.1} parent=0
    #allocation3 [shape = 'u8[65536]{0}', space=vmem, size = 0x10000, scoped, tag = 'input window, operand 2, single buffered']
    #allocation4 [shape = 's32[1]{0}', space=sflag, size = 0x4, scoped, tag = 'scoped memory for _lambda_.1']
    #allocation5 [shape = 's32[1]{0}', space=sflag, size = 0x4, scoped, tag = 'scoped memory for _lambda_.1']
    #allocation6 [shape = 'u8[262144]{0}', space=vmem, size = 0x40000, scoped, tag = 'input window, operand 3, single buffered']
    #allocation7 [shape = 's32[1]{0}', space=sflag, size = 0x4, scoped, tag = 'scoped memory for _lambda_.1']
    #allocation8 [shape = 'u8[65536]{0}', space=vmem, size = 0x10000, scoped, tag = 'input window, operand 5, single buffered']
    #allocation9 [shape = 'u8[3072]{0}', space=vmem, size = 0xc00, scoped, tag = 'output window, operand 1, single buffered']
    %14 = vsyncpa [#allocation4], 0
    %15 = vsyncpa [#allocation7], 0
    %16 = vsyncpa [#allocation5], 0
    // Predicated region
    $region2: #{_lambda_.1} parent=1 // pred_check
      _
    $region3: #{_lambda_.1} parent=1 // pred_check_branch
      %18 = sbr.rel (0) target = $region5
    $region4: #{_lambda_.1} parent=1 // pred_region
      _
    $region5: #{_lambda_.1} parent=1 // pred_fallthru
      _
    // Predicated region
    $region6: #{_lambda_.1} parent=1 // pred_check
      _
    $region7: #{_lambda_.1} parent=1 // pred_check_branch
      %20 = sbr.rel (0) target = $region9
    $region8: #{_lambda_.1} parent=1 // pred_region
      _
    $region9: #{_lambda_.1} parent=1 // pred_fallthru
      _
    // Predicated region
    $region10: #{_lambda_.1} parent=1 // pred_check
      _
    $region11: #{_lambda_.1} parent=1 // pred_check_branch
      %22 = sbr.rel (0) target = $region13
    $region12: #{_lambda_.1} parent=1 // pred_region
      %24 = vsyncadd [#allocation4], 0
      %s25 = sshll.u32 %s2, 4
      %s26 = int_to_ptr.hbm [resolvable:$true] %s25
      %s27 = sshll.u32 [#allocation3], 4
      %s28 = int_to_ptr.vmem [resolvable:$true] %s27
      %33 = dma.hbm_to_vmem [thread:$0]  %s26, 2048, %s28, [#allocation4], 512, 512, 32
    $region13: #{_lambda_.1} parent=1 // pred_fallthru
      _
    // Predicated region
    $region14: #{_lambda_.1} parent=1 // pred_check
      _
    $region15: #{_lambda_.1} parent=1 // pred_check_branch
      %35 = sbr.rel (0) target = $region17
    $region16: #{_lambda_.1} parent=1 // pred_region
      %37 = vsyncadd [#allocation7], 0
      %s38 = sshll.u32 %s3, 4
      %s39 = int_to_ptr.hbm [resolvable:$true] %s38
      %s40 = sshll.u32 [#allocation6], 4
      %s41 = int_to_ptr.vmem [resolvable:$true] %s40
      %46 = dma.hbm_to_vmem [thread:$0]  %s39, 8192, %s41, [#allocation7], 512, 512, 32
    $region17: #{_lambda_.1} parent=1 // pred_fallthru
      _
    // Predicated region
    $region18: #{_lambda_.1} parent=1 // pred_check
      _
    $region19: #{_lambda_.1} parent=1 // pred_check_branch
      %48 = sbr.rel (0) target = $region21
    $region20: #{_lambda_.1} parent=1 // pred_region
      _
    $region21: #{_lambda_.1} parent=1 // pred_fallthru
      _
    // Predicated region
    $region22: #{_lambda_.1} parent=1 // pred_check
      _
    $region23: #{_lambda_.1} parent=1 // pred_check_branch
      %50 = sbr.rel (0) target = $region25
    $region24: #{_lambda_.1} parent=1 // pred_region
      %52 = vsyncadd [#allocation7], 0
      %s53 = sshll.u32 %s5, 4
      %s54 = int_to_ptr.hbm [resolvable:$true] %s53
      %s55 = sshll.u32 [#allocation8], 4
      %s56 = int_to_ptr.vmem [resolvable:$true] %s55
      %61 = dma.hbm_to_vmem [thread:$0]  %s54, 2048, %s56, [#allocation7], 128, 128, 8
    $region25: #{_lambda_.1} parent=1 // pred_fallthru
      _
    // Predicated region
    $region26: #{_lambda_.1} parent=1 // pred_check
      _
    $region27: #{_lambda_.1} parent=1 // pred_check_branch
      %63 = sbr.rel (0) target = $region29
    $region28: #{_lambda_.1} parent=1 // pred_region
      _
    $region29: #{_lambda_.1} parent=1 // pred_fallthru
      _
    // Predicated region
    $region30: #{_lambda_.1} parent=1 // pred_check
      _
    $region31: #{_lambda_.1} parent=1 // pred_check_branch
      %65 = sbr.rel (0) target = $region33
    $region32: #{_lambda_.1} parent=1 // pred_region
      %67 = dma.done [#allocation4], 2048
    $region33: #{_lambda_.1} parent=1 // pred_fallthru
      _
    // Predicated region
    $region34: #{_lambda_.1} parent=1 // pred_check
      _
    $region35: #{_lambda_.1} parent=1 // pred_check_branch
      %69 = sbr.rel (0) target = $region37
    $region36: #{_lambda_.1} parent=1 // pred_region
      %71 = dma.done [#allocation7], 8192
    $region37: #{_lambda_.1} parent=1 // pred_fallthru
      _
    // Predicated region
    $region38: #{_lambda_.1} parent=1 // pred_check
      _
    $region39: #{_lambda_.1} parent=1 // pred_check_branch
      %73 = sbr.rel (0) target = $region41
    $region40: #{_lambda_.1} parent=1 // pred_region
      %75 = dma.done [#allocation7], 2048
    $region41: #{_lambda_.1} parent=1 // pred_fallthru
      _
    %p76 = scmp.eq.s32.totalorder 0, 0
    // Predicated region
    $region42: #{_lambda_.1} parent=1 // pred_check
      %p77 = pneg %p76
    $region43: #{_lambda_.1} parent=1 // pred_check_branch
      %79 = sbr.rel (%p77) target = $region45
    $region44: #{_lambda_.1} parent=1 // pred_region
      %v80 = vld [vmem:[%s1 + $0x2] sm:$0xf]
      %81 = vst [vmem:[#allocation2] sm:$0xf] %v80
    $region45: #{_lambda_.1} parent=1 // pred_fallthru
      _
    %v82 = vld [vmem:[#allocation2] sm:$0x3]
    %v83 = vld [vmem:[#allocation2 + $0x2] sm:$0x3]
    %v84 = vld [vmem:[%s0] sm:$0x3]
    %v85 = vld [vmem:[#allocation3] sm:$0xff]
    %v86 = vld [vmem:[#allocation3 + $0x8] sm:$0xff]
    %v87 = vld [vmem:[#allocation3 + $0x10] sm:$0xff]
    %v88 = vld [vmem:[#allocation3 + $0x18] sm:$0xff]
    %v89 = vld [vmem:[#allocation3 + $0x20] sm:$0xff]
    %v90 = vld [vmem:[#allocation3 + $0x28] sm:$0xff]
    %v91 = vld [vmem:[#allocation3 + $0x30] sm:$0xff]
    %v92 = vld [vmem:[#allocation3 + $0x38] sm:$0xff]
    %v93 = vld [vmem:[#allocation3 + $0x40] sm:$0xff]
    %v94 = vld [vmem:[#allocation3 + $0x48] sm:$0xff]
    %v95 = vld [vmem:[#allocation3 + $0x50] sm:$0xff]
    %v96 = vld [vmem:[#allocation3 + $0x58] sm:$0xff]
    %v97 = vld [vmem:[#allocation3 + $0x60] sm:$0xff]
    %v98 = vld [vmem:[#allocation3 + $0x68] sm:$0xff]
    %v99 = vld [vmem:[#allocation3 + $0x70] sm:$0xff]
    %v100 = vld [vmem:[#allocation3 + $0x78] sm:$0xff]
    %v101 = vld [vmem:[#allocation6] sm:$0xff]
    %v102 = vld [vmem:[#allocation6 + $0x8] sm:$0xff]
    %v103 = vld [vmem:[#allocation6 + $0x10] sm:$0xff]
    %v104 = vld [vmem:[#allocation6 + $0x18] sm:$0xff]
    %v105 = vld [vmem:[#allocation6 + $0x20] sm:$0xff]
    %v106 = vld [vmem:[#allocation6 + $0x28] sm:$0xff]
    %v107 = vld [vmem:[#allocation6 + $0x30] sm:$0xff]
    %v108 = vld [vmem:[#allocation6 + $0x38] sm:$0xff]
    %v109 = vld [vmem:[#allocation6 + $0x40] sm:$0xff]
    %v110 = vld [vmem:[#allocation6 + $0x48] sm:$0xff]
    %v111 = vld [vmem:[#allocation6 + $0x50] sm:$0xff]
    %v112 = vld [vmem:[#allocation6 + $0x58] sm:$0xff]
    %v113 = vld [vmem:[#allocation6 + $0x60] sm:$0xff]
    %v114 = vld [vmem:[#allocation6 + $0x68] sm:$0xff]
    %v115 = vld [vmem:[#allocation6 + $0x70] sm:$0xff]
    %v116 = vld [vmem:[#allocation6 + $0x78] sm:$0xff]
    %v117 = vld [vmem:[#allocation6 + $0x80] sm:$0xff]
    %v118 = vld [vmem:[#allocation6 + $0x88] sm:$0xff]
    %v119 = vld [vmem:[#allocation6 + $0x90] sm:$0xff]
    %v120 = vld [vmem:[#allocation6 + $0x98] sm:$0xff]
    %v121 = vld [vmem:[#allocation6 + $0xa0] sm:$0xff]
    %v122 = vld [vmem:[#allocation6 + $0xa8] sm:$0xff]
    %v123 = vld [vmem:[#allocation6 + $0xb0] sm:$0xff]
    %v124 = vld [vmem:[#allocation6 + $0xb8] sm:$0xff]
    %v125 = vld [vmem:[#allocation6 + $0xc0] sm:$0xff]
    %v126 = vld [vmem:[#allocation6 + $0xc8] sm:$0xff]
    %v127 = vld [vmem:[#allocation6 + $0xd0] sm:$0xff]
    %v128 = vld [vmem:[#allocation6 + $0xd8] sm:$0xff]
    %v129 = vld [vmem:[#allocation6 + $0xe0] sm:$0xff]
    %v130 = vld [vmem:[#allocation6 + $0xe8] sm:$0xff]
    %v131 = vld [vmem:[#allocation6 + $0xf0] sm:$0xff]
    %v132 = vld [vmem:[#allocation6 + $0xf8] sm:$0xff]
    %v133 = vld [vmem:[#allocation6 + $0x100] sm:$0xff]
    %v134 = vld [vmem:[#allocation6 + $0x108] sm:$0xff]
    %v135 = vld [vmem:[#allocation6 + $0x110] sm:$0xff]
    %v136 = vld [vmem:[#allocation6 + $0x118] sm:$0xff]
    %v137 = vld [vmem:[#allocation6 + $0x120] sm:$0xff]
    %v138 = vld [vmem:[#allocation6 + $0x128] sm:$0xff]
    %v139 = vld [vmem:[#allocation6 + $0x130] sm:$0xff]
    %v140 = vld [vmem:[#allocation6 + $0x138] sm:$0xff]
    %v141 = vld [vmem:[#allocation6 + $0x140] sm:$0xff]
    %v142 = vld [vmem:[#allocation6 + $0x148] sm:$0xff]
    %v143 = vld [vmem:[#allocation6 + $0x150] sm:$0xff]
    %v144 = vld [vmem:[#allocation6 + $0x158] sm:$0xff]
    %v145 = vld [vmem:[#allocation6 + $0x160] sm:$0xff]
    %v146 = vld [vmem:[#allocation6 + $0x168] sm:$0xff]
    %v147 = vld [vmem:[#allocation6 + $0x170] sm:$0xff]
    %v148 = vld [vmem:[#allocation6 + $0x178] sm:$0xff]
    %v149 = vld [vmem:[#allocation6 + $0x180] sm:$0xff]
    %v150 = vld [vmem:[#allocation6 + $0x188] sm:$0xff]
    %v151 = vld [vmem:[#allocation6 + $0x190] sm:$0xff]
    %v152 = vld [vmem:[#allocation6 + $0x198] sm:$0xff]
    %v153 = vld [vmem:[#allocation6 + $0x1a0] sm:$0xff]
    %v154 = vld [vmem:[#allocation6 + $0x1a8] sm:$0xff]
    %v155 = vld [vmem:[#allocation6 + $0x1b0] sm:$0xff]
    %v156 = vld [vmem:[#allocation6 + $0x1b8] sm:$0xff]
    %v157 = vld [vmem:[#allocation6 + $0x1c0] sm:$0xff]
    %v158 = vld [vmem:[#allocation6 + $0x1c8] sm:$0xff]
    %v159 = vld [vmem:[#allocation6 + $0x1d0] sm:$0xff]
    %v160 = vld [vmem:[#allocation6 + $0x1d8] sm:$0xff]
    %v161 = vld [vmem:[#allocation6 + $0x1e0] sm:$0xff]
    %v162 = vld [vmem:[#allocation6 + $0x1e8] sm:$0xff]
    %v163 = vld [vmem:[#allocation6 + $0x1f0] sm:$0xff]
    %v164 = vld [vmem:[#allocation6 + $0x1f8] sm:$0xff]
    %165 = vmatpush.msra.mxu0 %v161
    %166 = vmatpush.msra.mxu0 %v157
    %167 = vmatpush.msra.mxu0 %v153
    %168 = vmatpush.msra.mxu0 %v149
    %169 = vmatpush.msra.mxu0 %v145
    %170 = vmatpush.msra.mxu0 %v141
    %171 = vmatpush.msra.mxu0 %v137
    %172 = vmatpush.msra.mxu0 %v133
    %173 = vmatpush.msra.mxu0 %v129
    %174 = vmatpush.msra.mxu0 %v125
    %175 = vmatpush.msra.mxu0 %v121
    %176 = vmatpush.msra.mxu0 %v117
    %177 = vmatpush.msra.mxu0 %v113
    %178 = vmatpush.msra.mxu0 %v109
    %179 = vmatpush.msra.mxu0 %v105
    %180 = vmatpush.msra.mxu0 %v101
    %181 = vmatmul.f32.gmra.mxu0 %v82
    %v182 = vpop.f32.mrf.mxu0
    %v183 = vadd.f32 0.0, %v182
    %184 = vdwg.mxu0
    %185 = vmatpush.msra.mxu0 %v162
    %186 = vmatpush.msra.mxu0 %v158
    %187 = vmatpush.msra.mxu0 %v154
    %188 = vmatpush.msra.mxu0 %v150
    %189 = vmatpush.msra.mxu0 %v146
    %190 = vmatpush.msra.mxu0 %v142
    %191 = vmatpush.msra.mxu0 %v138
    %192 = vmatpush.msra.mxu0 %v134
    %193 = vmatpush.msra.mxu0 %v130
    %194 = vmatpush.msra.mxu0 %v126
    %195 = vmatpush.msra.mxu0 %v122
    %196 = vmatpush.msra.mxu0 %v118
    %197 = vmatpush.msra.mxu0 %v114
    %198 = vmatpush.msra.mxu0 %v110
    %199 = vmatpush.msra.mxu0 %v106
    %200 = vmatpush.msra.mxu0 %v102
    %201 = vmatmul.f32.gmra.mxu0 %v82
    %v202 = vpop.f32.mrf.mxu0
    %v203 = vadd.f32 0.0, %v202
    %204 = vdwg.mxu0
    %205 = vmatpush.msra.mxu0 %v163
    %206 = vmatpush.msra.mxu0 %v159
    %207 = vmatpush.msra.mxu0 %v155
    %208 = vmatpush.msra.mxu0 %v151
    %209 = vmatpush.msra.mxu0 %v147
    %210 = vmatpush.msra.mxu0 %v143
    %211 = vmatpush.msra.mxu0 %v139
    %212 = vmatpush.msra.mxu0 %v135
    %213 = vmatpush.msra.mxu0 %v131
    %214 = vmatpush.msra.mxu0 %v127
    %215 = vmatpush.msra.mxu0 %v123
    %216 = vmatpush.msra.mxu0 %v119
    %217 = vmatpush.msra.mxu0 %v115
    %218 = vmatpush.msra.mxu0 %v111
    %219 = vmatpush.msra.mxu0 %v107
    %220 = vmatpush.msra.mxu0 %v103
    %221 = vmatmul.f32.gmra.mxu0 %v82
    %v222 = vpop.f32.mrf.mxu0
    %v223 = vadd.f32 0.0, %v222
    %224 = vdwg.mxu0
    %225 = vmatpush.msra.mxu0 %v164
    %226 = vmatpush.msra.mxu0 %v160
    %227 = vmatpush.msra.mxu0 %v156
    %228 = vmatpush.msra.mxu0 %v152
    %229 = vmatpush.msra.mxu0 %v148
    %230 = vmatpush.msra.mxu0 %v144
    %231 = vmatpush.msra.mxu0 %v140
    %232 = vmatpush.msra.mxu0 %v136
    %233 = vmatpush.msra.mxu0 %v132
    %234 = vmatpush.msra.mxu0 %v128
    %235 = vmatpush.msra.mxu0 %v124
    %236 = vmatpush.msra.mxu0 %v120
    %237 = vmatpush.msra.mxu0 %v116
    %238 = vmatpush.msra.mxu0 %v112
    %239 = vmatpush.msra.mxu0 %v108
    %240 = vmatpush.msra.mxu0 %v104
    %241 = vmatmul.f32.gmra.mxu0 %v82
    %v242 = vpop.f32.mrf.mxu0
    %v243 = vadd.f32 0.0, %v242
    %244 = vdwg.mxu0
    %vm245 = vcmask 261120
    %v247 = vsel %vm245, %v84, 0
    %249 = vmatpush.msra.mxu0 0.0
    %250 = vmatpush.msra.mxu0 0.0
    %251 = vmatpush.msra.mxu0 0.0
    %252 = vmatpush.msra.mxu0 0.0
    %253 = vmatpush.msra.mxu0 0.0
    %254 = vmatpush.msra.mxu0 0.0
    %255 = vmatpush.msra.mxu0 0.0
    %256 = vmatpush.msra.mxu0 0.0
    %257 = vmatpush.msra.mxu0 0.0
    %258 = vmatpush.msra.mxu0 0.0
    %259 = vmatpush.msra.mxu0 0.0
    %260 = vmatpush.msra.mxu0 0.0
    %261 = vmatpush.msra.mxu0 %v97
    %262 = vmatpush.msra.mxu0 %v93
    %263 = vmatpush.msra.mxu0 %v89
    %264 = vmatpush.msra.mxu0 %v85
    %265 = vmatmul.f32.gmra.mxu0 %v247
    %v266 = vpop.f32.mrf.mxu0
    %v267 = vadd.f32 %v183, %v266
    %268 = vdwg.mxu0
    %269 = vmatpush.msra.mxu0 0.0
    %270 = vmatpush.msra.mxu0 0.0
    %271 = vmatpush.msra.mxu0 0.0
    %272 = vmatpush.msra.mxu0 0.0
    %273 = vmatpush.msra.mxu0 0.0
    %274 = vmatpush.msra.mxu0 0.0
    %275 = vmatpush.msra.mxu0 0.0
    %276 = vmatpush.msra.mxu0 0.0
    %277 = vmatpush.msra.mxu0 0.0
    %278 = vmatpush.msra.mxu0 0.0
    %279 = vmatpush.msra.mxu0 0.0
    %280 = vmatpush.msra.mxu0 0.0
    %281 = vmatpush.msra.mxu0 %v98
    %282 = vmatpush.msra.mxu0 %v94
    %283 = vmatpush.msra.mxu0 %v90
    %284 = vmatpush.msra.mxu0 %v86
    %285 = vmatmul.f32.gmra.mxu0 %v247
    %v286 = vpop.f32.mrf.mxu0
    %v287 = vadd.f32 %v203, %v286
    %288 = vdwg.mxu0
    %289 = vmatpush.msra.mxu0 0.0
    %290 = vmatpush.msra.mxu0 0.0
    %291 = vmatpush.msra.mxu0 0.0
    %292 = vmatpush.msra.mxu0 0.0
    %293 = vmatpush.msra.mxu0 0.0
    %294 = vmatpush.msra.mxu0 0.0
    %295 = vmatpush.msra.mxu0 0.0
    %296 = vmatpush.msra.mxu0 0.0
    %297 = vmatpush.msra.mxu0 0.0
    %298 = vmatpush.msra.mxu0 0.0
    %299 = vmatpush.msra.mxu0 0.0
    %300 = vmatpush.msra.mxu0 0.0
    %301 = vmatpush.msra.mxu0 %v99
    %302 = vmatpush.msra.mxu0 %v95
    %303 = vmatpush.msra.mxu0 %v91
    %304 = vmatpush.msra.mxu0 %v87
    %305 = vmatmul.f32.gmra.mxu0 %v247
    %v306 = vpop.f32.mrf.mxu0
    %v307 = vadd.f32 %v223, %v306
    %308 = vdwg.mxu0
    %309 = vmatpush.msra.mxu0 0.0
    %310 = vmatpush.msra.mxu0 0.0
    %311 = vmatpush.msra.mxu0 0.0
    %312 = vmatpush.msra.mxu0 0.0
    %313 = vmatpush.msra.mxu0 0.0
    %314 = vmatpush.msra.mxu0 0.0
    %315 = vmatpush.msra.mxu0 0.0
    %316 = vmatpush.msra.mxu0 0.0
    %317 = vmatpush.msra.mxu0 0.0
    %318 = vmatpush.msra.mxu0 0.0
    %319 = vmatpush.msra.mxu0 0.0
    %320 = vmatpush.msra.mxu0 0.0
    %321 = vmatpush.msra.mxu0 %v100
    %322 = vmatpush.msra.mxu0 %v96
    %323 = vmatpush.msra.mxu0 %v92
    %324 = vmatpush.msra.mxu0 %v88
    %325 = vmatmul.f32.gmra.mxu0 %v247
    %v326 = vpop.f32.mrf.mxu0
    %v327 = vadd.f32 %v243, %v326
    %328 = vdwg.mxu0
    %v329 = vld [vmem:[%s4] sm:$0xf]
    %v331 = vperm.slane %v329, 0
    %v332 = vperm.slane %v329, 1
    %v333 = vperm.slane %v329, 2
    %v334 = vperm.slane %v329, 3
    %v339 = vadd.f32 %v267, %v331
    %v340 = vadd.f32 %v287, %v332
    %v341 = vadd.f32 %v307, %v333
    %v342 = vadd.f32 %v327, %v334
    %v343 = vxor.u32 %v339, 2147483648
    %v344 = vmul.f32 %v343, 1.442695
    %v345 = vpow.pop %v344
    %v346 = vadd.f32 %v345, 1.0
    %v347 = vrcp.pop %v346
    %v348 = vmul.f32 %v346, %v347
    %v349 = vsub.f32 1.0, %v348
    %v350 = vmul.f32 %v347, %v349
    %v351 = vadd.f32 %v347, %v350
    %vm352 = vweird.f32 %v346
    %vm353 = vweird.f32 %v347
    %vm354 = vmor %vm352, %vm353
    %v355 = vsel %vm354, %v347, %v351
    %v356 = vand.u32 2147483647, %v346
    %vm357 = vcmp.eq.f32.partialorder %v356, 8.507059e+37
    %v358 = vand.u32 %v346, 2147483648
    %v359 = vor.u32 1.1754944e-38, %v358
    %v360 = vsel %vm357, %v359, %v355
    %v361 = vmul.f32 1.0, %v360
    %v362 = vxor.u32 %v340, 2147483648
    %v363 = vmul.f32 %v362, 1.442695
    %v364 = vpow.pop %v363
    %v365 = vadd.f32 %v364, 1.0
    %v366 = vrcp.pop %v365
    %v367 = vmul.f32 %v365, %v366
    %v368 = vsub.f32 1.0, %v367
    %v369 = vmul.f32 %v366, %v368
    %v370 = vadd.f32 %v366, %v369
    %vm371 = vweird.f32 %v365
    %vm372 = vweird.f32 %v366
    %vm373 = vmor %vm371, %vm372
    %v374 = vsel %vm373, %v366, %v370
    %v375 = vand.u32 2147483647, %v365
    %vm376 = vcmp.eq.f32.partialorder %v375, 8.507059e+37
    %v377 = vand.u32 %v365, 2147483648
    %v378 = vor.u32 1.1754944e-38, %v377
    %v379 = vsel %vm376, %v378, %v374
    %v380 = vmul.f32 1.0, %v379
    %v381 = vtanh.pop %v341
    %v382 = vxor.u32 %v342, 2147483648
    %v383 = vmul.f32 %v382, 1.442695
    %v384 = vpow.pop %v383
    %v385 = vadd.f32 %v384, 1.0
    %v386 = vrcp.pop %v385
    %v387 = vmul.f32 %v385, %v386
    %v388 = vsub.f32 1.0, %v387
    %v389 = vmul.f32 %v386, %v388
    %v390 = vadd.f32 %v386, %v389
    %vm391 = vweird.f32 %v385
    %vm392 = vweird.f32 %v386
    %vm393 = vmor %vm391, %vm392
    %v394 = vsel %vm393, %v386, %v390
    %v395 = vand.u32 2147483647, %v385
    %vm396 = vcmp.eq.f32.partialorder %v395, 8.507059e+37
    %v397 = vand.u32 %v385, 2147483648
    %v398 = vor.u32 1.1754944e-38, %v397
    %v399 = vsel %vm396, %v398, %v394
    %v400 = vmul.f32 1.0, %v399
    %v401 = vmul.f32 %v380, %v83
    %v402 = vmul.f32 %v361, %v381
    %v403 = vadd.f32 %v401, %v402
    %v404 = vtanh.pop %v403
    %v405 = vmul.f32 %v400, %v404
    %v406 = vld [vmem:[#allocation8] sm:$0xff]
    %v407 = vld [vmem:[#allocation8 + $0x8] sm:$0xff]
    %v408 = vld [vmem:[#allocation8 + $0x10] sm:$0xff]
    %v409 = vld [vmem:[#allocation8 + $0x18] sm:$0xff]
    %v410 = vld [vmem:[#allocation8 + $0x20] sm:$0xff]
    %v411 = vld [vmem:[#allocation8 + $0x28] sm:$0xff]
    %v412 = vld [vmem:[#allocation8 + $0x30] sm:$0xff]
    %v413 = vld [vmem:[#allocation8 + $0x38] sm:$0xff]
    %v414 = vld [vmem:[#allocation8 + $0x40] sm:$0xff]
    %v415 = vld [vmem:[#allocation8 + $0x48] sm:$0xff]
    %v416 = vld [vmem:[#allocation8 + $0x50] sm:$0xff]
    %v417 = vld [vmem:[#allocation8 + $0x58] sm:$0xff]
    %v418 = vld [vmem:[#allocation8 + $0x60] sm:$0xff]
    %v419 = vld [vmem:[#allocation8 + $0x68] sm:$0xff]
    %v420 = vld [vmem:[#allocation8 + $0x70] sm:$0xff]
    %v421 = vld [vmem:[#allocation8 + $0x78] sm:$0xff]
    %v422 = vld [vmem:[%s6] sm:$0x1]
    %v424 = vperm.slane %v422, 0
    %426 = vmatpush.msra.mxu0 %v421
    %427 = vmatpush.msra.mxu0 %v420
    %428 = vmatpush.msra.mxu0 %v419
    %429 = vmatpush.msra.mxu0 %v418
    %430 = vmatpush.msra.mxu0 %v417
    %431 = vmatpush.msra.mxu0 %v416
    %432 = vmatpush.msra.mxu0 %v415
    %433 = vmatpush.msra.mxu0 %v414
    %434 = vmatpush.msra.mxu0 %v413
    %435 = vmatpush.msra.mxu0 %v412
    %436 = vmatpush.msra.mxu0 %v411
    %437 = vmatpush.msra.mxu0 %v410
    %438 = vmatpush.msra.mxu0 %v409
    %439 = vmatpush.msra.mxu0 %v408
    %440 = vmatpush.msra.mxu0 %v407
    %441 = vmatpush.msra.mxu0 %v406
    %442 = vmatmul.f32.gmra.mxu0 %v405
    %v443 = vpop.f32.mrf.mxu0
    %v444 = vadd.f32 %v424, %v443
    %445 = vdwg.mxu0
    %vm446 = vcmask 1041408
    %v447 = vsel %vm446, %v444, -inf
    %448 = vmax.xlane.f32.xlu0 %v447
    %v449 = vpop.xlane.xlu0 %448
    %v450 = vsub.f32 %v444, %v449
    %v451 = vmul.f32 %v450, 1.442695
    %v452 = vpow.pop %v451
    %v453 = vsel %vm446, %v452, 0.0
    %454 = vadd.xlane.f32.xlu0 %v453
    %v455 = vpop.xlane.xlu0 %454
    %v456 = vrcp.pop %v455
    %v457 = vmul.f32 %v455, %v456
    %v458 = vsub.f32 1.0, %v457
    %v459 = vmul.f32 %v456, %v458
    %v460 = vadd.f32 %v456, %v459
    %vm461 = vweird.f32 %v455
    %vm462 = vweird.f32 %v456
    %vm463 = vmor %vm461, %vm462
    %v464 = vsel %vm463, %v456, %v460
    %v465 = vand.u32 2147483647, %v455
    %vm466 = vcmp.eq.f32.partialorder %v465, 8.507059e+37
    %v467 = vand.u32 %v455, 2147483648
    %v468 = vor.u32 1.1754944e-38, %v467
    %v469 = vsel %vm466, %v468, %v464
    %v470 = vmul.f32 %v452, %v469
    %v473 = vrot.slane %v403, 6
    %v474 = vsel %vm446, %v405, %v473
    %476 = vst [vmem:[#allocation2] sm:$0xf] %v474
    %477 = vst [vmem:[%s7] sm:$0x3] %v470
    // Predicated region
    $region46: #{_lambda_.1} parent=1 // pred_check
      %p478 = pneg %p76
    $region47: #{_lambda_.1} parent=1 // pred_check_branch
      %480 = sbr.rel (%p478) target = $region49
    $region48: #{_lambda_.1} parent=1 // pred_region
      %v482 = vrot.slane %v405, 6
      %v483 = vrot.slane %v403, 4
      %v484 = vsel %vm446, %v470, %v482
      %vm485 = vcmask 1043456
      %v486 = vsel %vm485, %v484, %v483
      %488 = vst [vmem:[#allocation9] sm:$0x3f] %v486
    $region49: #{_lambda_.1} parent=1 // pred_fallthru
      _
    // Predicated region
    $region50: #{_lambda_.1} parent=1 // pred_check
      _
    $region51: #{_lambda_.1} parent=1 // pred_check_branch
      %490 = sbr.rel (0) target = $region53
    $region52: #{_lambda_.1} parent=1 // pred_region
      _
    $region53: #{_lambda_.1} parent=1 // pred_fallthru
      _
    // Predicated region
    $region54: #{_lambda_.1} parent=1 // pred_check
      _
    $region55: #{_lambda_.1} parent=1 // pred_check_branch
      %492 = sbr.rel (0) target = $region57
    $region56: #{_lambda_.1} parent=1 // pred_region
      %494 = vsyncadd [#allocation5], 0
      %s496 = sshll.u32 [#allocation9], 4
      %s497 = int_to_ptr.vmem [resolvable:$true] %s496
      %s498 = sshll.u32 %s8, 4
      %s499 = int_to_ptr.hbm [resolvable:$true] %s498
      %501 = dma.vmem_to_hbm [thread:$0]  %s497, 96, %s499, [#allocation5]
    $region57: #{_lambda_.1} parent=1 // pred_fallthru
      _
    // Predicated region
    $region58: #{_lambda_.1} parent=1 // pred_check
      _
    $region59: #{_lambda_.1} parent=1 // pred_check_branch
      %503 = sbr.rel (0) target = $region61
    $region60: #{_lambda_.1} parent=1 // pred_region
      _
    $region61: #{_lambda_.1} parent=1 // pred_fallthru
      _
    // Predicated region
    $region62: #{_lambda_.1} parent=1 // pred_check
      _
    $region63: #{_lambda_.1} parent=1 // pred_check_branch
      %505 = sbr.rel (0) target = $region65
    $region64: #{_lambda_.1} parent=1 // pred_region
      %507 = dma.done [#allocation5], 96
    $region65: #{_lambda_.1} parent=1 // pred_fallthru
      _
    %508 = vsyncpa [#allocation4], 1
    %509 = vsyncpa [#allocation7], 1
    %510 = vsyncpa [#allocation5], 1

</llo_original>
